<compile_context>
chip_gen: v7x
topology: tpu7x:2x2x1
jax: 0.10.0
libtpu: 0.0.40
codegen_flags: <defaults>
</compile_context>

<pallas_src>
import jax
import jax.numpy as jnp
from jax.experimental import pallas as pl
from jax.experimental.pallas import tpu as pltpu


def _round_up(x, m):
    return (x + m - 1) // m * m


def _cdiv(a, b):
    return (a + b - 1) // b


def _masked_patch_kernel(patches_ref, w_ref, cls_ref, mask_ref, code_ref, out_ref):
    # patches_ref: (TM, K)    bf16   (cls / pad rows are zeros)
    # w_ref:       (K, Epad)  bf16   constant across the grid (single-buffered)
    # cls_ref:     (1, Epad)  f32    constant
    # mask_ref:    (1, Epad)  f32    constant
    # code_ref:    (TM, 1)    int32  0 -> projection, 1 -> cls, 2 -> mask
    # out_ref:     (TM, Epad) out_dtype
    proj = jnp.dot(patches_ref[...], w_ref[...],
                   preferred_element_type=jnp.float32)            # MXU, f32 acc
    code = code_ref[...]                                          # (TM, 1)
    emb = jnp.where(code == 2, mask_ref[...],
                    jnp.where(code == 1, cls_ref[...], proj))     # VPU 3-way select
    out_ref[...] = emb.astype(out_ref.dtype)                      # aligned full-tile store


def _const_spec(block_shape):
    # Constant-across-grid blocks: single-buffer them to halve their VMEM cost.
    try:
        return pl.BlockSpec(block_shape, lambda i: (0, 0),
                            pipeline_mode=pl.Buffered(1))
    except (AttributeError, TypeError):       # older jax: no pipeline_mode kwarg
        return pl.BlockSpec(block_shape, lambda i: (0, 0))


def masked_patch_embedding(src, mask_idx, weight, cls_emb, mask_emb, patch_size,
                           *, row_tile=1024, min_grid_steps=2, out_dtype=None):
    """src: (B, C, H, W).  mask_idx: (B, M) int32 sequence positions (into the
    length N+1 sequence, cls at position 0) to overwrite with mask_emb; pad
    ragged masks with -1 (never matches).  weight: Conv2d (E, C, P, P), no bias.
    cls_emb: (1, 1, E); mask_emb: (1, E).  Returns (B, N+1, E) in `out_dtype`
    (default src.dtype; pass jnp.bfloat16 if the downstream stack is bf16 to
    halve output HBM traffic)."""
    B, C, H, W = src.shape
    P = patch_size
    E = weight.shape[0]
    Hp, Wp = H // P, W // P
    N = Hp * Wp
    K = C * P * P
    S = N + 1                                   # sequence length incl. cls
    rows_total = B * S
    if out_dtype is None:
        out_dtype = src.dtype

    # ---- row-tile / padding geometry --------------------------------------
    Epad = _round_up(E, 128)                    # lane-dense output stores
    rows8 = _round_up(rows_total, 8)
    max_steps = max(rows8 // 8, 1)
    n_steps = max(_cdiv(rows8, row_tile), min(min_grid_steps, max_steps))
    TM = _round_up(_cdiv(rows8, n_steps), 8)    # balanced, sublane-aligned tiles
    Rpad = _round_up(rows_total, TM)
    grid = (Rpad // TM,)

    # ---- (rows, K) row stream with cls rows as zero patches ---------------
    # TODO(synk): single fused XLA relayout pass; see header for in-kernel plan.
    patches = src.reshape(B, C, Hp, P, Wp, P)
    patches = patches.transpose(0, 2, 4, 1, 3, 5).reshape(B, N, K)
    row_stream = jnp.concatenate(
        [jnp.zeros((B, 1, K), dtype=src.dtype), patches], axis=1)
    row_stream = row_stream.reshape(rows_total, K)
    row_stream = jnp.pad(row_stream, ((0, Rpad - rows_total), (0, 0)))
    row_stream = row_stream.astype(jnp.bfloat16)

    # ---- per-row select code: 0 -> projection, 1 -> cls, 2 -> mask --------
    pos = jnp.arange(S, dtype=jnp.int32)
    is_masked = (pos[None, :, None] == mask_idx[:, None, :]).any(axis=-1)  # (B, S)
    is_cls = (pos == 0)[None, :]                                            # (1, S)
    code = jnp.where(is_masked, 2, jnp.where(is_cls, 1, 0)).astype(jnp.int32)
    code = code.reshape(rows_total, 1)
    code = jnp.pad(code, ((0, Rpad - rows_total), (0, 0)))

    # ---- constant operands -------------------------------------------------
    w_t = weight.reshape(E, K).T                                            # (K, E)
    w_t = jnp.pad(w_t, ((0, 0), (0, Epad - E))).astype(jnp.bfloat16)        # (K, Epad)
    cls2d = jnp.pad(cls_emb.reshape(1, E).astype(jnp.float32),
                    ((0, 0), (0, Epad - E)))                                # (1, Epad)
    mask2d = jnp.pad(mask_emb.reshape(1, E).astype(jnp.float32),
                     ((0, 0), (0, Epad - E)))                               # (1, Epad)

    # ---- VMEM budget + scheduler hint --------------------------------------
    out_bytes = jnp.dtype(out_dtype).itemsize
    vmem_est = (2 * TM * K * 2                 # patch rows, double-buffered bf16
                + 1 * K * Epad * 2             # weight, single-buffered bf16
                + 2 * 1 * Epad * 4             # cls + mask rows, single-buffered
                + 2 * TM * 128 * 4             # (TM, 1) int32 codes, lane-padded
                + 2 * TM * Epad * out_bytes)   # output, double-buffered
    vmem_limit = int(min(64 * 2**20, max(16 * 2**20, 2 * vmem_est)))
    cost = pl.CostEstimate(
        flops=2 * Rpad * K * Epad,
        transcendentals=0,
        bytes_accessed=(Rpad * K * 2 + K * Epad * 2 + 2 * Epad * 4
                        + Rpad * 4 + Rpad * Epad * out_bytes))

    out = pl.pallas_call(
        _masked_patch_kernel,
        out_shape=jax.ShapeDtypeStruct((Rpad, Epad), out_dtype),
        grid_spec=pltpu.PrefetchScalarGridSpec(
            num_scalar_prefetch=0,
            grid=grid,
            in_specs=[
                pl.BlockSpec((TM, K), lambda i: (i, 0)),       # patch row tile
                _const_spec((K, Epad)),                        # projection weight
                _const_spec((1, Epad)),                        # cls embedding
                _const_spec((1, Epad)),                        # mask embedding
                pl.BlockSpec((TM, 1), lambda i: (i, 0)),       # per-row codes
            ],
            out_specs=pl.BlockSpec((TM, Epad), lambda i: (i, 0)),
        ),
        compiler_params=pltpu.CompilerParams(
            dimension_semantics=("parallel",),
            vmem_limit_bytes=vmem_limit),
        cost_estimate=cost,
    )(row_stream, w_t, cls2d, mask2d, code)

    # Slices are no-ops when rows_total % TM == 0 and E % 128 == 0 (typical
    # production E = 768 / 1024), so the kernel output is written exactly once.
    return out[:rows_total, :E].reshape(B, S, E)


def reference(src, mask_idx, weight, cls_emb, mask_emb, P):
    """Pure-JAX (f32) mirror of the PyTorch forward, for correctness check."""
    B, C, H, W = src.shape
    E = weight.shape[0]
    Hp, Wp = H // P, W // P
    N = Hp * Wp
    K = C * P * P
    patches = src.reshape(B, C, Hp, P, Wp, P).transpose(0, 2, 4, 1, 3, 5)
    patches = patches.reshape(B, N, K)
    patch_emb = jnp.einsum('bnk,ek->bne', patches, weight.reshape(E, K))
    cls = jnp.broadcast_to(cls_emb.reshape(1, 1, E), (B, 1, E))
    emb = jnp.concatenate([cls, patch_emb], axis=1)
    pos = jnp.arange(N + 1)
    is_masked = (pos[None, :, None] == mask_idx[:, None, :]).any(axis=-1)
    return jnp.where(is_masked[:, :, None], mask_emb.reshape(1, 1, E), emb)


if __name__ == "__main__":
    # Small shapes implied by the module: image 16x16, patch 8 -> 2x2 = 4
    # patches, seq = 5 with cls, emb_size 32, channels 4, batch 2.
    B, C, H, W = 2, 4, 16, 16
    P = 8
    E = 32

    key = jax.random.PRNGKey(0)
    k_src, k_w, k_cls, k_mask = jax.random.split(key, 4)

    src = jax.random.normal(k_src, (B, C, H, W), dtype=jnp.float32)
    # nn.Conv2d(channels, emb, kernel=patch, stride=patch, bias=False) weight.
    weight = 0.02 * jax.random.normal(k_w, (E, C, P, P), dtype=jnp.float32)
    # __init__ zero-inits these; use deterministic random values so the
    # cls / mask paths are actually exercised in the test.
    cls_emb = 0.02 * jax.random.normal(k_cls, (1, 1, E), dtype=jnp.float32)
    mask_emb = 0.02 * jax.random.normal(k_mask, (1, E), dtype=jnp.float32)

    # Per-sample masked sequence positions (position 0 exercises the masked-cls
    # path, where the PyTorch scatter_ overwrites the cls embedding too).
    mask_idx = jnp.array([[1, 3], [0, 4]], dtype=jnp.int32)

    out = masked_patch_embedding(src, mask_idx, weight, cls_emb, mask_emb, P)
    out = jax.block_until_ready(out)

    ref = reference(src, mask_idx, weight, cls_emb, mask_emb, P)
    assert out.shape == (B, (H // P) * (W // P) + 1, E)
    assert out.dtype == src.dtype
    # bf16 matmul inputs with f32 accumulation -> loosened tolerance.
    assert jnp.allclose(out, ref, rtol=2e-2, atol=2e-2), "mismatch vs reference"

    # bf16-output path (halves output HBM traffic for bf16 transformer stacks).
    out_bf16 = masked_patch_embedding(src, mask_idx, weight, cls_emb, mask_emb, P,
                                      out_dtype=jnp.bfloat16)
    out_bf16 = jax.block_until_ready(out_bf16)
    assert jnp.allclose(out_bf16.astype(jnp.float32), ref, rtol=3e-2, atol=3e-2), \
        "bf16-output mismatch vs reference"

    print("KERNEL_OK")
</pallas_src>

<mosaic_0001>
module attributes {stable_mosaic.version = 11 : i64} {
  func.func @_masked_patch_kernel(%arg0: i32, %arg1: memref<8x256xbf16, #tpu.memory_space<vmem>>, %arg2: memref<256x128xbf16, #tpu.memory_space<vmem>>, %arg3: memref<1x128xf32, #tpu.memory_space<vmem>>, %arg4: memref<1x128xf32, #tpu.memory_space<vmem>>, %arg5: memref<8x1xi32, #tpu.memory_space<vmem>>, %arg6: memref<8x128xf32, #tpu.memory_space<vmem>>) attributes {dimension_semantics = [#tpu.dimension_semantics<parallel>], iteration_bounds = array<i64: 2>, scalar_prefetch = 0 : i64, scratch_operands = 0 : i64, tpu.core_type = #tpu.core_type<tc>, window_params = [{transform_indices = @transform_0, window_bounds = array<i64: 8, 256>}, {pipeline_mode = #tpu.pipeline_mode<synchronous>, transform_indices = @transform_1, window_bounds = array<i64: 256, 128>}, {pipeline_mode = #tpu.pipeline_mode<synchronous>, transform_indices = @transform_2, window_bounds = array<i64: 1, 128>}, {pipeline_mode = #tpu.pipeline_mode<synchronous>, transform_indices = @transform_3, window_bounds = array<i64: 1, 128>}, {transform_indices = @transform_4, window_bounds = array<i64: 8, 1>}, {transform_indices = @transform_5, window_bounds = array<i64: 8, 128>}]} {
    %c0 = arith.constant 0 : index
    %c0_0 = arith.constant 0 : index
    %0 = vector.load %arg1[%c0, %c0_0] : memref<8x256xbf16, #tpu.memory_space<vmem>>, vector<8x256xbf16>
    %c0_1 = arith.constant 0 : index
    %c0_2 = arith.constant 0 : index
    %1 = vector.load %arg2[%c0_1, %c0_2] : memref<256x128xbf16, #tpu.memory_space<vmem>>, vector<256x128xbf16>
    %cst = arith.constant dense<0.000000e+00> : vector<8x128xf32>
    %2 = tpu.matmul %0, %1, %cst {dimension_numbers = #tpu.dot_dimension_numbers<[1], [0], [0], [1], [0, 0, 1, 1], [], []>} : vector<8x256xbf16>, vector<256x128xbf16>, vector<8x128xf32> -> vector<8x128xf32>
    %c0_3 = arith.constant 0 : index
    %c0_4 = arith.constant 0 : index
    %3 = vector.load %arg5[%c0_3, %c0_4] : memref<8x1xi32, #tpu.memory_space<vmem>>, vector<8x1xi32>
    %c2_i32 = arith.constant 2 : i32
    %4 = vector.broadcast %c2_i32 : i32 to vector<8x1xi32>
    %5 = arith.cmpi eq, %3, %4 : vector<8x1xi32>
    %c0_5 = arith.constant 0 : index
    %c0_6 = arith.constant 0 : index
    %6 = vector.load %arg4[%c0_5, %c0_6] : memref<1x128xf32, #tpu.memory_space<vmem>>, vector<1x128xf32>
    %c1_i32 = arith.constant 1 : i32
    %7 = vector.broadcast %c1_i32 : i32 to vector<8x1xi32>
    %8 = arith.cmpi eq, %3, %7 : vector<8x1xi32>
    %c0_7 = arith.constant 0 : index
    %c0_8 = arith.constant 0 : index
    %9 = vector.load %arg3[%c0_7, %c0_8] : memref<1x128xf32, #tpu.memory_space<vmem>>, vector<1x128xf32>
    %10 = vector.shape_cast %8 : vector<8x1xi1> to vector<8x1xi1>
    %11 = vector.broadcast %10 : vector<8x1xi1> to vector<8x128xi1>
    %12 = vector.shape_cast %9 : vector<1x128xf32> to vector<1x128xf32>
    %13 = vector.broadcast %12 : vector<1x128xf32> to vector<8x128xf32>
    %14 = arith.select %11, %13, %2 : vector<8x128xi1>, vector<8x128xf32>
    %15 = vector.shape_cast %5 : vector<8x1xi1> to vector<8x1xi1>
    %16 = vector.broadcast %15 : vector<8x1xi1> to vector<8x128xi1>
    %17 = vector.shape_cast %6 : vector<1x128xf32> to vector<1x128xf32>
    %18 = vector.broadcast %17 : vector<1x128xf32> to vector<8x128xf32>
    %19 = arith.select %16, %18, %14 : vector<8x128xi1>, vector<8x128xf32>
    %c0_9 = arith.constant 0 : index
    %c0_10 = arith.constant 0 : index
    %20 = vector.load %arg6[%c0_9, %c0_10] : memref<8x128xf32, #tpu.memory_space<vmem>>, vector<8x128xf32>
    tpu.vector_store %arg6[%c0_9, %c0_10], %19 {strides = array<i32>} : memref<8x128xf32, #tpu.memory_space<vmem>>, vector<8x128xf32>,
    return
  }
  func.func @transform_0(%arg0: i32) -> (i32, i32) {
    %c0_i32 = arith.constant 0 : i32
    %c0_i32_0 = arith.constant 0 : i32
    return %arg0, %c0_i32 : i32, i32
  }
  func.func @transform_1(%arg0: i32) -> (i32, i32) {
    %c0_i32 = arith.constant 0 : i32
    %c0_i32_0 = arith.constant 0 : i32
    %c0_i32_1 = arith.constant 0 : i32
    return %c0_i32, %c0_i32_0 : i32, i32
  }
  func.func @transform_2(%arg0: i32) -> (i32, i32) {
    %c0_i32 = arith.constant 0 : i32
    %c0_i32_0 = arith.constant 0 : i32
    %c0_i32_1 = arith.constant 0 : i32
    return %c0_i32, %c0_i32_0 : i32, i32
  }
  func.func @transform_3(%arg0: i32) -> (i32, i32) {
    %c0_i32 = arith.constant 0 : i32
    %c0_i32_0 = arith.constant 0 : i32
    %c0_i32_1 = arith.constant 0 : i32
    return %c0_i32, %c0_i32_0 : i32, i32
  }
  func.func @transform_4(%arg0: i32) -> (i32, i32) {
    %c0_i32 = arith.constant 0 : i32
    %c0_i32_0 = arith.constant 0 : i32
    return %arg0, %c0_i32 : i32, i32
  }
  func.func @transform_5(%arg0: i32) -> (i32, i32) {
    %c0_i32 = arith.constant 0 : i32
    %c0_i32_0 = arith.constant 0 : i32
    return %arg0, %c0_i32 : i32, i32
  }
}

</mosaic_0001>

<llo_original>
// kernel: tpu_custom_call.1
$region0: #{tpu_custom_call.1}
  #allocation0 [shape = 'u32[]', space=smem, size = 0x4, offset = 0x4, fixed_abs, tag = 'smem constant byte address 0x4 - core index']
  #allocation1 [shape = 'u32[144,128]{1,0:T(1,128)}', space=vmem, size = 0x12000, scoped, tag = 'internal scratch']
  %s0 = inlined_call_operand.vmem [shape: bf16[16,256], index: 0, kind: input, shape index: {}]
  %s1 = inlined_call_operand.hbm [shape: bf16[256,128], index: 1, kind: input, shape index: {}]
  %s2 = inlined_call_operand.vmem [shape: f32[1,128], index: 2, kind: input, shape index: {}]
  %s3 = inlined_call_operand.vmem [shape: f32[1,128], index: 3, kind: input, shape index: {}]
  %s4 = inlined_call_operand.vmem [shape: s32[16,1], index: 4, kind: input, shape index: {}]
  %s5 = inlined_call_operand.hbm [shape: f32[16,128], index: 5, kind: output, shape index: {}]
  %s6 = sld [smem:[#allocation0]]
  $region57: #{tpu_custom_call.1} parent=0
    _
  %s8 = ssub.s32 1, %s6
  %s9 = scalar_select 0, %s8, %s6
  $region1: #{tpu_custom_call.1} parent=0
    #allocation2 [shape = 'u8[65536]{0}', space=vmem, size = 0x10000, scoped, tag = 'input window, operand 1, single buffered']
    #allocation3 [shape = 's32[2]{0}', space=sflag, size = 0x8, scoped, tag = 'scoped memory for tpu_custom_call.1']
    #allocation4 [shape = 's32[2]{0}', space=sflag, size = 0x8, scoped, tag = 'scoped memory for tpu_custom_call.1']
    #allocation5 [shape = 'u8[8192]{0}', space=vmem, size = 0x2000, scoped, tag = 'output window, operand 0']
    %10 = vsyncpa [#allocation3], 0
    %11 = vsyncpa [#allocation4], 0
    %s12 = scalar_lea.sflag [#allocation4], 1
    %13 = vsyncpa %s12, 0
    loop: start=0, step=1, limit=4
    $region2: #{tpu_custom_call.1} parent=1 // loop_pre_header
      _
    $region3: #{tpu_custom_call.1} parent=1 // loop_header
      %s15 = sphi 0, %s19
      %p16 = scmp.ge.s32.totalorder %s15, 4
      %s25 = sphi 0, %s27
      %s28 = sphi 0, %s25
      %s29 = sphi 0, %s28
      %s45 = sphi 0, %s29
      %s49 = sphi 0, %s49
      %s51 = sphi 0, %s49
      %s52 = sphi 0, %s51
      %s66 = sphi 0, %s52
      %s70 = sphi 0, %s70
      %s72 = sphi 0, %s70
      %s73 = sphi 0, %s72
      %s87 = sphi 0, %s73
      %s91 = sphi 0, %s91
      %s93 = sphi 0, %s91
      %s94 = sphi 0, %s93
      %s108 = sphi 0, %s94
      %s114 = sphi 0, %s116
      %s117 = sphi 0, %s114
      %s118 = sphi 0, %s117
      %s134 = sphi 0, %s118
      %s140 = sphi 0, %s142
      %s143 = sphi 0, %s140
      %s144 = sphi 0, %s143
      %s160 = sphi 0, %s144
    $region4: #{tpu_custom_call.1} parent=1 // loop_header_branch
      %18 = sbr.rel (%p16) target = $region8
    $region5: #{tpu_custom_call.1} parent=1 // loop_body
      %s20 = ssub.s32 %s15, 1
      %s21 = ssub.s32 %s15, 2
      %s22 = sadd.s32 %s15, 1
      %s23 = ssub.s32 %s15, %s22
      %p24 = scmp.eq.s32.totalorder %s23, 0
      %s26 = sadd.s32 %s25, 1
      %s27 = scalar_select %p24, %s25, %s26
      %p30 = pneg %p24
      %p31 = scmp.eq.s32.totalorder %s15, 1
      %p32 = por %p30, %p31
      %p33 = scmp.ne.s32.totalorder %s25, %s28
      %p34 = scmp.eq.s32.totalorder %s15, 0
      %p35 = por %p33, %p34
      %p36 = scmp.ne.s32.totalorder %s25, %s28
      %p37 = scmp.eq.s32.totalorder %s20, 1
      %p38 = por %p36, %p37
      %p39 = scmp.ne.s32.totalorder %s28, %s29
      %p40 = scmp.eq.s32.totalorder %s20, 0
      %p41 = por %p39, %p40
      %p42 = scmp.ne.s32.totalorder %s28, %s29
      %p43 = scmp.eq.s32.totalorder %s21, 1
      %p44 = por %p42, %p43
      %p46 = scmp.ne.s32.totalorder %s29, %s45
      %p47 = scmp.eq.s32.totalorder %s21, 0
      %p48 = por %p46, %p47
      %s50 = sadd.s32 %s49, 1
      %p53 = scmp.eq.s32.totalorder %s15, 1
      %p54 = scmp.ne.s32.totalorder %s49, %s51
      %p55 = scmp.eq.s32.totalorder %s15, 0
      %p56 = por %p54, %p55
      %p57 = scmp.ne.s32.totalorder %s49, %s51
      %p58 = scmp.eq.s32.totalorder %s20, 1
      %p59 = por %p57, %p58
      %p60 = scmp.ne.s32.totalorder %s51, %s52
      %p61 = scmp.eq.s32.totalorder %s20, 0
      %p62 = por %p60, %p61
      %p63 = scmp.ne.s32.totalorder %s51, %s52
      %p64 = scmp.eq.s32.totalorder %s21, 1
      %p65 = por %p63, %p64
      %p67 = scmp.ne.s32.totalorder %s52, %s66
      %p68 = scmp.eq.s32.totalorder %s21, 0
      %p69 = por %p67, %p68
      %s71 = sadd.s32 %s70, 1
      %p74 = scmp.eq.s32.totalorder %s15, 1
      %p75 = scmp.ne.s32.totalorder %s70, %s72
      %p76 = scmp.eq.s32.totalorder %s15, 0
      %p77 = por %p75, %p76
      %p78 = scmp.ne.s32.totalorder %s70, %s72
      %p79 = scmp.eq.s32.totalorder %s20, 1
      %p80 = por %p78, %p79
      %p81 = scmp.ne.s32.totalorder %s72, %s73
      %p82 = scmp.eq.s32.totalorder %s20, 0
      %p83 = por %p81, %p82
      %p84 = scmp.ne.s32.totalorder %s72, %s73
      %p85 = scmp.eq.s32.totalorder %s21, 1
      %p86 = por %p84, %p85
      %p88 = scmp.ne.s32.totalorder %s73, %s87
      %p89 = scmp.eq.s32.totalorder %s21, 0
      %p90 = por %p88, %p89
      %s92 = sadd.s32 %s91, 1
      %p95 = scmp.eq.s32.totalorder %s15, 1
      %p96 = scmp.ne.s32.totalorder %s91, %s93
      %p97 = scmp.eq.s32.totalorder %s15, 0
      %p98 = por %p96, %p97
      %p99 = scmp.ne.s32.totalorder %s91, %s93
      %p100 = scmp.eq.s32.totalorder %s20, 1
      %p101 = por %p99, %p100
      %p102 = scmp.ne.s32.totalorder %s93, %s94
      %p103 = scmp.eq.s32.totalorder %s20, 0
      %p104 = por %p102, %p103
      %p105 = scmp.ne.s32.totalorder %s93, %s94
      %p106 = scmp.eq.s32.totalorder %s21, 1
      %p107 = por %p105, %p106
      %p109 = scmp.ne.s32.totalorder %s94, %s108
      %p110 = scmp.eq.s32.totalorder %s21, 0
      %p111 = por %p109, %p110
      %s112 = ssub.s32 %s15, %s22
      %p113 = scmp.eq.s32.totalorder %s112, 0
      %s115 = sadd.s32 %s114, 1
      %s116 = scalar_select %p113, %s114, %s115
      %p119 = pneg %p113
      %p120 = scmp.eq.s32.totalorder %s15, 1
      %p121 = por %p119, %p120
      %p122 = scmp.ne.s32.totalorder %s114, %s117
      %p123 = scmp.eq.s32.totalorder %s15, 0
      %p124 = por %p122, %p123
      %p125 = scmp.ne.s32.totalorder %s114, %s117
      %p126 = scmp.eq.s32.totalorder %s20, 1
      %p127 = por %p125, %p126
      %p128 = scmp.ne.s32.totalorder %s117, %s118
      %p129 = scmp.eq.s32.totalorder %s20, 0
      %p130 = por %p128, %p129
      %p131 = scmp.ne.s32.totalorder %s117, %s118
      %p132 = scmp.eq.s32.totalorder %s21, 1
      %p133 = por %p131, %p132
      %p135 = scmp.ne.s32.totalorder %s118, %s134
      %p136 = scmp.eq.s32.totalorder %s21, 0
      %p137 = por %p135, %p136
      %s138 = ssub.s32 %s15, %s22
      %p139 = scmp.eq.s32.totalorder %s138, 0
      %s141 = sadd.s32 %s140, 1
      %s142 = scalar_select %p139, %s140, %s141
      %p145 = pneg %p139
      %p146 = scmp.eq.s32.totalorder %s15, 1
      %p147 = por %p145, %p146
      %p148 = scmp.ne.s32.totalorder %s140, %s143
      %p149 = scmp.eq.s32.totalorder %s15, 0
      %p150 = por %p148, %p149
      %p151 = scmp.ne.s32.totalorder %s140, %s143
      %p152 = scmp.eq.s32.totalorder %s20, 1
      %p153 = por %p151, %p152
      %p154 = scmp.ne.s32.totalorder %s143, %s144
      %p155 = scmp.eq.s32.totalorder %s20, 0
      %p156 = por %p154, %p155
      %p157 = scmp.ne.s32.totalorder %s143, %s144
      %p158 = scmp.eq.s32.totalorder %s21, 1
      %p159 = por %p157, %p158
      %p161 = scmp.ne.s32.totalorder %s144, %s160
      %p162 = scmp.eq.s32.totalorder %s21, 0
      %p163 = por %p161, %p162
      %p164 = scmp.le.s32.totalorder 1, %s15
      %p165 = scmp.lt.s32.totalorder %s15, 3
      %p166 = pnand %p164, %p165
      %p167 = pneg %p166
      // Predicated region
      $region9: #{tpu_custom_call.1} parent=5 // pred_check
        _
      $region10: #{tpu_custom_call.1} parent=5 // pred_check_branch
        %169 = sbr.rel (%p166) target = $region12
      $region11: #{tpu_custom_call.1} parent=5 // pred_region
        %s170 = ssub.s32 %s15, 1
        // Predicated region
        $region13: #{tpu_custom_call.1} parent=11 // pred_check
          %p171 = pneg %p62
        $region14: #{tpu_custom_call.1} parent=11 // pred_check_branch
          %173 = sbr.rel (%p171) target = $region16
        $region15: #{tpu_custom_call.1} parent=11 // pred_region
          %s175 = ssub.s32 2048, 2048
          %176 = vsyncadd [#allocation3], %s175
          %s177 = sshll.u32 [#allocation2], 4
          %s178 = int_to_ptr.vmem [resolvable:$true] %s177
          %183 = dma.hbm_to_vmem [thread:$0]  %s1, 2048, %s178, [#allocation3], 64, 64, 4
        $region16: #{tpu_custom_call.1} parent=11 // pred_fallthru
          _
        // Predicated region
        $region17: #{tpu_custom_call.1} parent=11 // pred_check
          %p184 = pneg %p83
        $region18: #{tpu_custom_call.1} parent=11 // pred_check_branch
          %186 = sbr.rel (%p184) target = $region20
        $region19: #{tpu_custom_call.1} parent=11 // pred_region
          _
        $region20: #{tpu_custom_call.1} parent=11 // pred_fallthru
          _
        // Predicated region
        $region21: #{tpu_custom_call.1} parent=11 // pred_check
          %p187 = pneg %p104
        $region22: #{tpu_custom_call.1} parent=11 // pred_check_branch
          %189 = sbr.rel (%p187) target = $region24
        $region23: #{tpu_custom_call.1} parent=11 // pred_region
          _
        $region24: #{tpu_custom_call.1} parent=11 // pred_fallthru
          _
      $region12: #{tpu_custom_call.1} parent=5 // pred_fallthru
        _
      %p190 = scmp.lt.s32.totalorder %s15, 2
      // Predicated region
      $region25: #{tpu_custom_call.1} parent=5 // pred_check
        %p191 = pneg %p190
      $region26: #{tpu_custom_call.1} parent=5 // pred_check_branch
        %193 = sbr.rel (%p191) target = $region28
      $region27: #{tpu_custom_call.1} parent=5 // pred_region
        // Predicated region
        $region29: #{tpu_custom_call.1} parent=27 // pred_check
          %p194 = pneg %p35
        $region30: #{tpu_custom_call.1} parent=27 // pred_check_branch
          %196 = sbr.rel (%p194) target = $region32
        $region31: #{tpu_custom_call.1} parent=27 // pred_region
          %p197 = scmp.lt.s32.totalorder %s15, 1
          %s198 = scalar_select %p197, %s15, 1
          %s199 = smul.addr %s198, 2
          %s200 = smul.addr %s199, 4
          %s201 = scalar_lea.vmem %s0, %s200
        $region32: #{tpu_custom_call.1} parent=27 // pred_fallthru
          _
        // Predicated region
        $region33: #{tpu_custom_call.1} parent=27 // pred_check
          %p202 = pneg %p124
        $region34: #{tpu_custom_call.1} parent=27 // pred_check_branch
          %204 = sbr.rel (%p202) target = $region36
        $region35: #{tpu_custom_call.1} parent=27 // pred_region
          %p205 = scmp.lt.s32.totalorder %s15, 1
          %s206 = scalar_select %p205, %s15, 1
          %s207 = smul.addr %s206, 8
          %s208 = scalar_lea.vmem %s4, %s207
        $region36: #{tpu_custom_call.1} parent=27 // pred_fallthru
          _
      $region28: #{tpu_custom_call.1} parent=5 // pred_fallthru
        _
      %p209 = scmp.le.s32.totalorder 1, %s15
      %p210 = scmp.lt.s32.totalorder %s15, 3
      %p211 = pnand %p209, %p210
      %p212 = pneg %p211
      // Predicated region
      $region37: #{tpu_custom_call.1} parent=5 // pred_check
        _
      $region38: #{tpu_custom_call.1} parent=5 // pred_check_branch
        %214 = sbr.rel (%p211) target = $region40
      $region39: #{tpu_custom_call.1} parent=5 // pred_region
        %s215 = ssub.s32 %s15, 1
        // Predicated region
        $region41: #{tpu_custom_call.1} parent=39 // pred_check
          %p216 = pneg %p62
        $region42: #{tpu_custom_call.1} parent=39 // pred_check_branch
          %218 = sbr.rel (%p216) target = $region44
        $region43: #{tpu_custom_call.1} parent=39 // pred_region
          %219 = dma.done [#allocation3], 2048
        $region44: #{tpu_custom_call.1} parent=39 // pred_fallthru
          _
        %p220 = scmp.lt.s32.totalorder %s20, 1
        %s221 = scalar_select %p220, %s20, 1
        %s222 = smul.addr %s221, 2
        %s223 = smul.addr %s222, 4
        %s224 = scalar_lea.vmem %s0, %s223
        %p225 = pneg %p41
        %p226 = pneg %p38
        %p227 = pneg %p62
        %p228 = pneg %p59
        %p229 = pneg %p83
        %p230 = pneg %p80
        %p231 = pneg %p104
        %p232 = pneg %p101
        %p233 = scmp.lt.s32.totalorder %s20, 1
        %s234 = scalar_select %p233, %s20, 1
        %s235 = smul.addr %s234, 8
        %s236 = scalar_lea.vmem %s4, %s235
        %p237 = pneg %p130
        %p238 = pneg %p127
        %p239 = pneg %p156
        %p240 = pneg %p153
        %s241 = sand.u32 %s143, 1
        %s242 = scalar_lea.sflag [#allocation4], %s241
        %s243 = sand.u32 %s143, 1
        %s244 = smul.addr %s243, 8
        %s245 = scalar_lea.vmem [#allocation5], %s244
        %p246 = scmp.lt.s32.totalorder %s20, 1
        %s247 = scalar_select %p246, %s20, 1
        %s248 = smul.addr %s247, 2
        %s249 = smul.addr %s248, 4
        %s250 = scalar_lea.vmem %s0, %s249
        %p251 = scmp.lt.s32.totalorder %s20, 1
        %s252 = scalar_select %p251, %s20, 1
        %s253 = smul.addr %s252, 8
        %s254 = scalar_lea.vmem %s4, %s253
        %v256 = vld [vmem:[%s250] sm:$0xff]
        %v257 = vld [vmem:[#allocation2] sm:$0xf]
        %v258 = vld [vmem:[#allocation2 + $0x4] sm:$0xf]
        %v259 = vld [vmem:[#allocation2 + $0x8] sm:$0xf]
        %v260 = vld [vmem:[#allocation2 + $0xc] sm:$0xf]
        %v261 = vld [vmem:[#allocation2 + $0x10] sm:$0xf]
        %v262 = vld [vmem:[#allocation2 + $0x14] sm:$0xf]
        %v263 = vld [vmem:[#allocation2 + $0x18] sm:$0xf]
        %v264 = vld [vmem:[#allocation2 + $0x1c] sm:$0xf]
        %v265 = vld [vmem:[#allocation2 + $0x20] sm:$0xf]
        %v266 = vld [vmem:[#allocation2 + $0x24] sm:$0xf]
        %v267 = vld [vmem:[#allocation2 + $0x28] sm:$0xf]
        %v268 = vld [vmem:[#allocation2 + $0x2c] sm:$0xf]
        %v269 = vld [vmem:[#allocation2 + $0x30] sm:$0xf]
        %v270 = vld [vmem:[#allocation2 + $0x34] sm:$0xf]
        %v271 = vld [vmem:[#allocation2 + $0x38] sm:$0xf]
        %v272 = vld [vmem:[#allocation2 + $0x3c] sm:$0xf]
        %v273 = vld [vmem:[#allocation2 + $0x40] sm:$0xf]
        %v274 = vld [vmem:[#allocation2 + $0x44] sm:$0xf]
        %v275 = vld [vmem:[#allocation2 + $0x48] sm:$0xf]
        %v276 = vld [vmem:[#allocation2 + $0x4c] sm:$0xf]
        %v277 = vld [vmem:[#allocation2 + $0x50] sm:$0xf]
        %v278 = vld [vmem:[#allocation2 + $0x54] sm:$0xf]
        %v279 = vld [vmem:[#allocation2 + $0x58] sm:$0xf]
        %v280 = vld [vmem:[#allocation2 + $0x5c] sm:$0xf]
        %v281 = vld [vmem:[#allocation2 + $0x60] sm:$0xf]
        %v282 = vld [vmem:[#allocation2 + $0x64] sm:$0xf]
        %v283 = vld [vmem:[#allocation2 + $0x68] sm:$0xf]
        %v284 = vld [vmem:[#allocation2 + $0x6c] sm:$0xf]
        %v285 = vld [vmem:[#allocation2 + $0x70] sm:$0xf]
        %v286 = vld [vmem:[#allocation2 + $0x74] sm:$0xf]
        %v287 = vld [vmem:[#allocation2 + $0x78] sm:$0xf]
        %v288 = vld [vmem:[#allocation2 + $0x7c] sm:$0xf]
        %v290 = vunpack.c.l.b16 %v256
        %v291 = vunpack.c.h.b16 %v256
        %v292 = vpack.c.b16 %v290, %v290
        %v293 = vpack.c.b16 %v291, %v291
        %v328 = vunpack.c.l.b16 %v257
        %v329 = vunpack.c.l.b16 %v258
        %v330 = vunpack.c.l.b16 %v259
        %v331 = vunpack.c.l.b16 %v260
        %v332 = vunpack.c.l.b16 %v261
        %v333 = vunpack.c.l.b16 %v262
        %v334 = vunpack.c.l.b16 %v263
        %v335 = vunpack.c.l.b16 %v264
        %v336 = vunpack.c.l.b16 %v265
        %v337 = vunpack.c.l.b16 %v266
        %v338 = vunpack.c.l.b16 %v267
        %v339 = vunpack.c.l.b16 %v268
        %v340 = vunpack.c.l.b16 %v269
        %v341 = vunpack.c.l.b16 %v270
        %v342 = vunpack.c.l.b16 %v271
        %v343 = vunpack.c.l.b16 %v272
        %v344 = vunpack.c.l.b16 %v273
        %v345 = vunpack.c.l.b16 %v274
        %v346 = vunpack.c.l.b16 %v275
        %v347 = vunpack.c.l.b16 %v276
        %v348 = vunpack.c.l.b16 %v277
        %v349 = vunpack.c.l.b16 %v278
        %v350 = vunpack.c.l.b16 %v279
        %v351 = vunpack.c.l.b16 %v280
        %v352 = vunpack.c.l.b16 %v281
        %v353 = vunpack.c.l.b16 %v282
        %v354 = vunpack.c.l.b16 %v283
        %v355 = vunpack.c.l.b16 %v284
        %v356 = vunpack.c.l.b16 %v285
        %v357 = vunpack.c.l.b16 %v286
        %v358 = vunpack.c.l.b16 %v287
        %v359 = vunpack.c.l.b16 %v288
        %v360 = vpack.c.b16 %v329, %v328
        %v361 = vpack.c.b16 %v331, %v330
        %v362 = vpack.c.b16 %v333, %v332
        %v363 = vpack.c.b16 %v335, %v334
        %v364 = vpack.c.b16 %v337, %v336
        %v365 = vpack.c.b16 %v339, %v338
        %v366 = vpack.c.b16 %v341, %v340
        %v367 = vpack.c.b16 %v343, %v342
        %v368 = vpack.c.b16 %v345, %v344
        %v369 = vpack.c.b16 %v347, %v346
        %v370 = vpack.c.b16 %v349, %v348
        %v371 = vpack.c.b16 %v351, %v350
        %v372 = vpack.c.b16 %v353, %v352
        %v373 = vpack.c.b16 %v355, %v354
        %v374 = vpack.c.b16 %v357, %v356
        %v375 = vpack.c.b16 %v359, %v358
        %392 = vmatprep.subr.bf16.mxu0 0
        %393 = vmatpush1.bf16.msra.mxu0 %v360
        %394 = vmatprep.subr.bf16.mxu0 0
        %395 = vmatpush1.bf16.msra.mxu0 %v361
        %396 = vmatprep.subr.bf16.mxu0 0
        %397 = vmatpush1.bf16.msra.mxu0 %v362
        %398 = vmatprep.subr.bf16.mxu0 0
        %399 = vmatpush1.bf16.msra.mxu0 %v363
        %400 = vmatprep.subr.bf16.mxu0 0
        %401 = vmatpush1.bf16.msra.mxu0 %v364
        %402 = vmatprep.subr.bf16.mxu0 0
        %403 = vmatpush1.bf16.msra.mxu0 %v365
        %404 = vmatprep.subr.bf16.mxu0 0
        %405 = vmatpush1.bf16.msra.mxu0 %v366
        %406 = vmatprep.subr.bf16.mxu0 0
        %407 = vmatpush1.bf16.msra.mxu0 %v367
        %408 = vmatprep.subr.bf16.mxu0 0
        %409 = vmatpush1.bf16.msra.mxu0 %v368
        %410 = vmatprep.subr.bf16.mxu0 0
        %411 = vmatpush1.bf16.msra.mxu0 %v369
        %412 = vmatprep.subr.bf16.mxu0 0
        %413 = vmatpush1.bf16.msra.mxu0 %v370
        %414 = vmatprep.subr.bf16.mxu0 0
        %415 = vmatpush1.bf16.msra.mxu0 %v371
        %416 = vmatprep.subr.bf16.mxu0 0
        %417 = vmatpush1.bf16.msra.mxu0 %v372
        %418 = vmatprep.subr.bf16.mxu0 0
        %419 = vmatpush1.bf16.msra.mxu0 %v373
        %420 = vmatprep.subr.bf16.mxu0 0
        %421 = vmatpush1.bf16.msra.mxu0 %v374
        %422 = vmatprep.subr.bf16.mxu0 0
        %423 = vmatpush1.bf16.msra.mxu0 %v375
        %424 = vmatprep.mubr.bf16.mxu0 %v293
        %425 = vmatmul.mubr.bf16.gmra.mrb[0].mxu0 %v292
        %v426 = vpop.f32.mrb[0].mxu0
        %v427 = vadd.f32 0.0, %v426
        %v428 = vpop.f32.mrb[0].mxu0
        %v429 = vpop.f32.mrb[0].mxu0
        %v430 = vpop.f32.mrb[0].mxu0
        %431 = vdwg.mxu0
        %v432 = vld [vmem:[%s254] sm:$0xff]
        %vm433 = vcmp.eq.s32.totalorder %v432, 2
        %v434 = vld [vmem:[%s3] sm:$0x1]
        %vm435 = vcmp.eq.s32.totalorder %v432, 1
        %v436 = vld [vmem:[%s2] sm:$0x1]
        %v437 = vsel %vm435, 1, 0
        %438 = vset.pattern.permute.xlu0 0
        %439 = vperm.xlu0 %438, %v437
        %v440 = vpop.permute.xlu0 %439
        %vm441 = vcmp.eq.s32.totalorder %v440, 1
        %v443 = vlaneseq
        %v444 = vshrl.u32 %v443, 7
        %v445 = vsub.s32 0, %v444
        %v446 = vrot.slane %v436, %v445
        %v448 = vsel %vm441, %v446, %v427
        %v449 = vsel %vm433, 1, 0
        %450 = vset.pattern.permute.xlu0 0
        %451 = vperm.xlu0 %450, %v449
        %v452 = vpop.permute.xlu0 %451
        %vm453 = vcmp.eq.s32.totalorder %v452, 1
        %v455 = vlaneseq
        %v456 = vshrl.u32 %v455, 7
        %v457 = vsub.s32 0, %v456
        %v458 = vrot.slane %v434, %v457
        %v460 = vsel %vm453, %v458, %v448
        %461 = vst [vmem:[%s245] sm:$0xff] %v460
        %s462 = sand.u32 %s143, 1
        %s463 = scalar_lea.sflag [#allocation4], %s462
        %s464 = sand.u32 %s143, 1
        %s465 = smul.addr %s464, 8
        %s466 = scalar_lea.vmem [#allocation5], %s465
        // Predicated region
        $region45: #{tpu_custom_call.1} parent=39 // pred_check
          %p467 = pneg %p153
        $region46: #{tpu_custom_call.1} parent=39 // pred_check_branch
          %469 = sbr.rel (%p467) target = $region48
        $region47: #{tpu_custom_call.1} parent=39 // pred_region
          %s471 = ssub.s32 128, 128
          %472 = vsyncadd %s463, %s471
          %s473 = smul.addr %s20, 128
          %s474 = scalar_lea.hbm %s5, %s473
          %s476 = sshll.u32 %s466, 4
          %s477 = int_to_ptr.vmem [resolvable:$true] %s476
          %479 = dma.vmem_to_hbm [thread:$0]  %s477, 128, %s474, %s463
        $region48: #{tpu_custom_call.1} parent=39 // pred_fallthru
          _
      $region40: #{tpu_custom_call.1} parent=5 // pred_fallthru
        _
      %p480 = scmp.le.s32.totalorder 2, %s15
      // Predicated region
      $region49: #{tpu_custom_call.1} parent=5 // pred_check
        %p481 = pneg %p480
      $region50: #{tpu_custom_call.1} parent=5 // pred_check_branch
        %483 = sbr.rel (%p481) target = $region52
      $region51: #{tpu_custom_call.1} parent=5 // pred_region
        %s484 = ssub.s32 %s15, 2
        // Predicated region
        $region53: #{tpu_custom_call.1} parent=51 // pred_check
          %p485 = pneg %p159
        $region54: #{tpu_custom_call.1} parent=51 // pred_check_branch
          %487 = sbr.rel (%p485) target = $region56
        $region55: #{tpu_custom_call.1} parent=51 // pred_region
          %s488 = sand.u32 %s144, 1
          %s489 = scalar_lea.sflag [#allocation4], %s488
          %s490 = sand.u32 %s144, 1
          %s491 = smul.addr %s490, 8
          %s492 = scalar_lea.vmem [#allocation5], %s491
          %493 = dma.done %s489, 128
        $region56: #{tpu_custom_call.1} parent=51 // pred_fallthru
          _
      $region52: #{tpu_custom_call.1} parent=5 // pred_fallthru
        _
    $region6: #{tpu_custom_call.1} parent=1 // loop_footer
      %s19 = sadd.s32 1, %s15
    $region7: #{tpu_custom_call.1} parent=1 // loop_footer_branch
      %14 = sbr.rel target = $region3
    $region8: #{tpu_custom_call.1} parent=1 // loop_exit
      _
    %494 = vsyncpa [#allocation3], 1
    %s495 = scalar_lea.sflag [#allocation3], 1
    %496 = vsyncpa %s495, 1
    %497 = vsyncpa [#allocation4], 1
    %s498 = scalar_lea.sflag [#allocation4], 1
    %499 = vsyncpa %s498, 1

</llo_original>
